<compile_context>
chip_gen: v6e
topology: v6e:2x2x1
jax: 0.10.0
libtpu: 0.0.40
codegen_flags: <defaults>
</compile_context>

<pallas_src>
import jax
import jax.numpy as jnp
from jax.experimental import pallas as pl
from jax.experimental.pallas import tpu as pltpu


_LANES = 128                     # lane width of a vreg (fast axis)
_SUBLANES = 8                    # sublane count of a vreg (slow axis)
_MAX_BLOCK_ROWS = 4096           # 4096 x 128 x 4 B = 2 MiB per f32 block
_SMALL_N_THRESHOLD = 1 << 17     # below this, fused plain-XLA beats a standalone kernel


def _action_mask_kernel(op_ref, mask_ref):
    # One VPU compare + one convert per vreg; purely HBM-bandwidth bound.
    mask_ref[...] = (op_ref[...] == 3).astype(mask_ref.dtype)


def _action_mask_pallas(operation: jax.Array, out_dtype) -> jax.Array:
    B, T = operation.shape
    n = B * T

    # Compare in a value-preserving dtype: op-code ints -> int32 (lossless),
    # floats stay float (torch compares in the original dtype; 3.7 != 3).
    if jnp.issubdtype(operation.dtype, jnp.floating):
        op = operation.astype(jnp.float32)
    else:
        op = operation.astype(jnp.int32)

    # --- lane-dense re-layout: flatten into (rows, 128) ---
    rows = -(-n // _LANES)
    padded_n = rows * _LANES

    flat = op.reshape(-1)
    if padded_n != n:
        # Minimal pad to the next 128 multiple only (pad value 0 != 3 -> mask 0).
        flat = jnp.pad(flat, (0, padded_n - n))
    op2d = flat.reshape(rows, _LANES)

    # Tile choice:
    #  * rows <= _MAX_BLOCK_ROWS: single full-dim block (always layout-legal).
    #  * otherwise: (8,128)-aligned blocks; Pallas pads/masks the partial last
    #    block, so no block-multiple padding of the array is needed.
    if rows <= _MAX_BLOCK_ROWS:
        block_rows = rows
    else:
        block_rows = _MAX_BLOCK_ROWS
    grid = (pl.cdiv(rows, block_rows),)

    bytes_accessed = padded_n * (op2d.dtype.itemsize + jnp.dtype(out_dtype).itemsize)

    out2d = pl.pallas_call(
        _action_mask_kernel,
        out_shape=jax.ShapeDtypeStruct((rows, _LANES), out_dtype),
        grid=grid,
        in_specs=[pl.BlockSpec((block_rows, _LANES), lambda i: (i, 0))],
        out_specs=pl.BlockSpec((block_rows, _LANES), lambda i: (i, 0)),
        compiler_params=pltpu.CompilerParams(
            # TODO(synk): on v7x, split the row axis across both TensorCores via
            # pltpu.CORE_PARALLEL / pl.core_map; "arbitrary" is generation-safe.
            dimension_semantics=("arbitrary",),
            vmem_limit_bytes=32 * 1024 * 1024,   # safe on v5e/v6e/v7x
        ),
        cost_estimate=pl.CostEstimate(
            flops=padded_n, transcendentals=0, bytes_accessed=bytes_accessed
        ),
    )(op2d)

    if padded_n != n:
        return out2d.reshape(-1)[:n].reshape(B, T)
    # 128-aligned: free reshape, no extra HBM pass.
    return out2d.reshape(B, T)


def action_mask(operation: jax.Array, *, out_dtype=jnp.float32,
                force_pallas: bool = False) -> jax.Array:
    """mask = out_dtype(operation == 3), shape-preserving ([B, T]).

    Defaults to float32 to match torch's `.float()`.  If the downstream
    consumer accepts bf16, pass out_dtype=jnp.bfloat16 to halve output traffic.
    For production, this one-compare op is best fused into the consumer
    (Decoder / masking) kernel; the standalone Pallas path is kept per spec.
    """
    B, T = operation.shape
    n = B * T
    if not force_pallas and n < _SMALL_N_THRESHOLD:
        # Tiny inputs (the module's real 2x8 case): launch + re-layout overhead
        # dwarfs the work; let XLA fuse a plain compare instead.
        return (operation == 3).astype(out_dtype)
    return _action_mask_pallas(operation, out_dtype)


class GeneratorDeTree:
    """JAX/Pallas port of Generator_deTree's forward-pass hot path.

    Only the in-module compute (action_mask) is implemented; external
    sub-modules have no definition in the provided source.
    """

    @staticmethod
    def state_init():
        return [[None], [], [], [], -1, -1, 0]

    def forward(self, LVT, state_below, inputs, state_prev=None):
        operation, action_emb, len_action = inputs
        mask = action_mask(operation)
        # TODO(synk): Graph.buildGraphs / TreeNode stack-LSTM calculation has no
        # definition in the provided source; cannot be translated faithfully.
        # TODO(synk): Decoder(...) has no definition in the provided source; the
        # computed action_mask is returned and remaining tensors passed through.
        outputs = mask
        states_pass = (action_emb, len_action, state_prev)
        return outputs, states_pass


if __name__ == "__main__":
    key = jax.random.PRNGKey(0)
    k_op, k_emb, k_sb, k_lvt = jax.random.split(key, 4)

    batch, seq, hidden = 2, 8, 32

    # operation: integer op codes in [0, 5]; op-code 3 marks "action" positions.
    operation = jax.random.randint(k_op, (batch, seq), 0, 6, dtype=jnp.int32)
    action_emb = jax.random.normal(k_emb, (batch, seq, hidden), dtype=jnp.float32)
    len_action = jnp.full((batch,), seq, dtype=jnp.int32)

    # Deterministic placeholder args for LVT / state_below (not consumed by the
    # kernelised path -- see TODO(synk) above).
    LVT = jax.random.normal(k_lvt, (hidden, hidden), dtype=jnp.float32)
    state_below = jax.random.normal(k_sb, (batch, seq, hidden), dtype=jnp.float32)

    model = GeneratorDeTree()
    outputs, states_pass = model.forward(
        LVT, state_below, (operation, action_emb, len_action), state_prev=None
    )
    outputs = jax.block_until_ready(outputs)

    # Reference check against plain-JAX semantics of the PyTorch line.
    ref = jnp.where(
        operation == 3, jnp.ones_like(operation), jnp.zeros_like(operation)
    ).astype(jnp.float32)
    assert outputs.shape == (batch, seq)
    assert outputs.dtype == jnp.float32
    assert bool(jnp.all(outputs == ref))

    # Pallas path, 128-aligned fast path (no pad / no slice), single block.
    op_aligned = jax.random.randint(jax.random.PRNGKey(1), (64, 1024), 0, 6,
                                    dtype=jnp.int32)
    out_aligned = jax.block_until_ready(action_mask(op_aligned, force_pallas=True))
    assert out_aligned.shape == op_aligned.shape
    assert out_aligned.dtype == jnp.float32
    assert bool(jnp.all(out_aligned == (op_aligned == 3).astype(jnp.float32)))

    # Pallas path, ragged size (minimal 128-pad + slice), full-dim block.
    op_ragged = jax.random.randint(jax.random.PRNGKey(2), (7, 531), 0, 6,
                                   dtype=jnp.int32)
    out_ragged = jax.block_until_ready(action_mask(op_ragged, force_pallas=True))
    assert out_ragged.shape == op_ragged.shape
    assert bool(jnp.all(out_ragged == (op_ragged == 3).astype(jnp.float32)))

    # Pallas path, multi-step grid (rows > _MAX_BLOCK_ROWS) with partial last block.
    op_big = jax.random.randint(jax.random.PRNGKey(3), (520, 1030), 0, 6,
                                dtype=jnp.int32)
    out_big = jax.block_until_ready(action_mask(op_big, force_pallas=True))
    assert out_big.shape == op_big.shape
    assert bool(jnp.all(out_big == (op_big == 3).astype(jnp.float32)))

    print("KERNEL_OK")
</pallas_src>

<mosaic_0001>
module attributes {stable_mosaic.version = 11 : i64} {
  func.func @_action_mask_kernel(%arg0: i32, %arg1: memref<512x128xi32, #tpu.memory_space<vmem>>, %arg2: memref<512x128xf32, #tpu.memory_space<vmem>>) attributes {dimension_semantics = [#tpu.dimension_semantics<arbitrary>], iteration_bounds = array<i64: 1>, scalar_prefetch = 0 : i64, scratch_operands = 0 : i64, tpu.core_type = #tpu.core_type<tc>, window_params = [{transform_indices = @transform_0, window_bounds = array<i64: 512, 128>}, {transform_indices = @transform_1, window_bounds = array<i64: 512, 128>}]} {
    %c0 = arith.constant 0 : index
    %c0_0 = arith.constant 0 : index
    %0 = vector.load %arg1[%c0, %c0_0] : memref<512x128xi32, #tpu.memory_space<vmem>>, vector<512x128xi32>
    %c3_i32 = arith.constant 3 : i32
    %1 = vector.broadcast %c3_i32 : i32 to vector<512x128xi32>
    %2 = arith.cmpi eq, %0, %1 : vector<512x128xi32>
    %3 = arith.extui %2 : vector<512x128xi1> to vector<512x128xi32>
    %4 = arith.sitofp %3 : vector<512x128xi32> to vector<512x128xf32>
    %c0_1 = arith.constant 0 : index
    %c0_2 = arith.constant 0 : index
    %5 = vector.load %arg2[%c0_1, %c0_2] : memref<512x128xf32, #tpu.memory_space<vmem>>, vector<512x128xf32>
    tpu.vector_store %arg2[%c0_1, %c0_2], %4 {strides = array<i32>} : memref<512x128xf32, #tpu.memory_space<vmem>>, vector<512x128xf32>,
    return
  }
  func.func @transform_0(%arg0: i32) -> (i32, i32) {
    %c0_i32 = arith.constant 0 : i32
    %c0_i32_0 = arith.constant 0 : i32
    return %arg0, %c0_i32 : i32, i32
  }
  func.func @transform_1(%arg0: i32) -> (i32, i32) {
    %c0_i32 = arith.constant 0 : i32
    %c0_i32_0 = arith.constant 0 : i32
    return %arg0, %c0_i32 : i32, i32
  }
}

</mosaic_0001>

<llo_original>
// kernel: tpu_custom_call.1
$region0: #{tpu_custom_call.1}
  #allocation0 [shape = 'u32[]', space=smem, size = 0x4, offset = 0x4, fixed_abs, tag = 'smem constant byte address 0x4 - core index']
  #allocation1 [shape = 'u32[144,128]{1,0:T(1,128)}', space=vmem, size = 0x12000, scoped, tag = 'internal scratch']
  %s0 = inlined_call_operand.hbm [shape: s32[512,128], index: 0, kind: input, shape index: {}]
  %s1 = inlined_call_operand.hbm [shape: f32[512,128], index: 1, kind: output, shape index: {}]
  %s2 = sld [smem:[#allocation0]]
  $region18: #{tpu_custom_call.1} parent=0
    _
  %s4 = ssub.s32 1, %s2
  %s5 = scalar_select 0, %s4, %s2
  $region1: #{tpu_custom_call.1} parent=0
    #allocation2 [shape = 'u8[262144]{0}', space=vmem, size = 0x40000, scoped, tag = 'input window, operand 0, single buffered']
    #allocation3 [shape = 's32[1]{0}', space=sflag, size = 0x4, scoped, tag = 'scoped memory for tpu_custom_call.1']
    #allocation4 [shape = 's32[1]{0}', space=sflag, size = 0x4, scoped, tag = 'scoped memory for tpu_custom_call.1']
    #allocation5 [shape = 'u8[262144]{0}', space=vmem, size = 0x40000, scoped, tag = 'output window, operand 0, single buffered']
    %6 = vsyncpa [#allocation3], 0
    %7 = vsyncpa [#allocation4], 0
    // Predicated region
    $region2: #{tpu_custom_call.1} parent=1 // pred_check
      _
    $region3: #{tpu_custom_call.1} parent=1 // pred_check_branch
      %9 = sbr.rel (0) target = $region5
    $region4: #{tpu_custom_call.1} parent=1 // pred_region
      %s11 = ssub.s32 8192, 8192
      %12 = vsyncadd [#allocation3], %s11
      %s13 = sshll.u32 [#allocation2], 4
      %s14 = int_to_ptr.vmem [resolvable:$true] %s13
      %19 = dma.hbm_to_vmem [thread:$0]  %s0, 8192, %s14, [#allocation3], 128, 128, 8
    $region5: #{tpu_custom_call.1} parent=1 // pred_fallthru
      _
    // Predicated region
    $region6: #{tpu_custom_call.1} parent=1 // pred_check
      _
    $region7: #{tpu_custom_call.1} parent=1 // pred_check_branch
      %21 = sbr.rel (0) target = $region9
    $region8: #{tpu_custom_call.1} parent=1 // pred_region
      %22 = dma.done [#allocation3], 8192
    $region9: #{tpu_custom_call.1} parent=1 // pred_fallthru
      _
    %v23 = vld [vmem:[#allocation2] sm:$0xff]
    %v24 = vld [vmem:[#allocation2 + $0x8] sm:$0xff]
    %v25 = vld [vmem:[#allocation2 + $0x10] sm:$0xff]
    %v26 = vld [vmem:[#allocation2 + $0x18] sm:$0xff]
    %v27 = vld [vmem:[#allocation2 + $0x20] sm:$0xff]
    %v28 = vld [vmem:[#allocation2 + $0x28] sm:$0xff]
    %v29 = vld [vmem:[#allocation2 + $0x30] sm:$0xff]
    %v30 = vld [vmem:[#allocation2 + $0x38] sm:$0xff]
    %v31 = vld [vmem:[#allocation2 + $0x40] sm:$0xff]
    %v32 = vld [vmem:[#allocation2 + $0x48] sm:$0xff]
    %v33 = vld [vmem:[#allocation2 + $0x50] sm:$0xff]
    %v34 = vld [vmem:[#allocation2 + $0x58] sm:$0xff]
    %v35 = vld [vmem:[#allocation2 + $0x60] sm:$0xff]
    %v36 = vld [vmem:[#allocation2 + $0x68] sm:$0xff]
    %v37 = vld [vmem:[#allocation2 + $0x70] sm:$0xff]
    %v38 = vld [vmem:[#allocation2 + $0x78] sm:$0xff]
    %v39 = vld [vmem:[#allocation2 + $0x80] sm:$0xff]
    %v40 = vld [vmem:[#allocation2 + $0x88] sm:$0xff]
    %v41 = vld [vmem:[#allocation2 + $0x90] sm:$0xff]
    %v42 = vld [vmem:[#allocation2 + $0x98] sm:$0xff]
    %v43 = vld [vmem:[#allocation2 + $0xa0] sm:$0xff]
    %v44 = vld [vmem:[#allocation2 + $0xa8] sm:$0xff]
    %v45 = vld [vmem:[#allocation2 + $0xb0] sm:$0xff]
    %v46 = vld [vmem:[#allocation2 + $0xb8] sm:$0xff]
    %v47 = vld [vmem:[#allocation2 + $0xc0] sm:$0xff]
    %v48 = vld [vmem:[#allocation2 + $0xc8] sm:$0xff]
    %v49 = vld [vmem:[#allocation2 + $0xd0] sm:$0xff]
    %v50 = vld [vmem:[#allocation2 + $0xd8] sm:$0xff]
    %v51 = vld [vmem:[#allocation2 + $0xe0] sm:$0xff]
    %v52 = vld [vmem:[#allocation2 + $0xe8] sm:$0xff]
    %v53 = vld [vmem:[#allocation2 + $0xf0] sm:$0xff]
    %v54 = vld [vmem:[#allocation2 + $0xf8] sm:$0xff]
    %v55 = vld [vmem:[#allocation2 + $0x100] sm:$0xff]
    %v56 = vld [vmem:[#allocation2 + $0x108] sm:$0xff]
    %v57 = vld [vmem:[#allocation2 + $0x110] sm:$0xff]
    %v58 = vld [vmem:[#allocation2 + $0x118] sm:$0xff]
    %v59 = vld [vmem:[#allocation2 + $0x120] sm:$0xff]
    %v60 = vld [vmem:[#allocation2 + $0x128] sm:$0xff]
    %v61 = vld [vmem:[#allocation2 + $0x130] sm:$0xff]
    %v62 = vld [vmem:[#allocation2 + $0x138] sm:$0xff]
    %v63 = vld [vmem:[#allocation2 + $0x140] sm:$0xff]
    %v64 = vld [vmem:[#allocation2 + $0x148] sm:$0xff]
    %v65 = vld [vmem:[#allocation2 + $0x150] sm:$0xff]
    %v66 = vld [vmem:[#allocation2 + $0x158] sm:$0xff]
    %v67 = vld [vmem:[#allocation2 + $0x160] sm:$0xff]
    %v68 = vld [vmem:[#allocation2 + $0x168] sm:$0xff]
    %v69 = vld [vmem:[#allocation2 + $0x170] sm:$0xff]
    %v70 = vld [vmem:[#allocation2 + $0x178] sm:$0xff]
    %v71 = vld [vmem:[#allocation2 + $0x180] sm:$0xff]
    %v72 = vld [vmem:[#allocation2 + $0x188] sm:$0xff]
    %v73 = vld [vmem:[#allocation2 + $0x190] sm:$0xff]
    %v74 = vld [vmem:[#allocation2 + $0x198] sm:$0xff]
    %v75 = vld [vmem:[#allocation2 + $0x1a0] sm:$0xff]
    %v76 = vld [vmem:[#allocation2 + $0x1a8] sm:$0xff]
    %v77 = vld [vmem:[#allocation2 + $0x1b0] sm:$0xff]
    %v78 = vld [vmem:[#allocation2 + $0x1b8] sm:$0xff]
    %v79 = vld [vmem:[#allocation2 + $0x1c0] sm:$0xff]
    %v80 = vld [vmem:[#allocation2 + $0x1c8] sm:$0xff]
    %v81 = vld [vmem:[#allocation2 + $0x1d0] sm:$0xff]
    %v82 = vld [vmem:[#allocation2 + $0x1d8] sm:$0xff]
    %v83 = vld [vmem:[#allocation2 + $0x1e0] sm:$0xff]
    %v84 = vld [vmem:[#allocation2 + $0x1e8] sm:$0xff]
    %v85 = vld [vmem:[#allocation2 + $0x1f0] sm:$0xff]
    %v86 = vld [vmem:[#allocation2 + $0x1f8] sm:$0xff]
    %vm87 = vcmp.eq.s32.totalorder %v23, 3
    %vm88 = vcmp.eq.s32.totalorder %v24, 3
    %vm89 = vcmp.eq.s32.totalorder %v25, 3
    %vm90 = vcmp.eq.s32.totalorder %v26, 3
    %vm91 = vcmp.eq.s32.totalorder %v27, 3
    %vm92 = vcmp.eq.s32.totalorder %v28, 3
    %vm93 = vcmp.eq.s32.totalorder %v29, 3
    %vm94 = vcmp.eq.s32.totalorder %v30, 3
    %vm95 = vcmp.eq.s32.totalorder %v31, 3
    %vm96 = vcmp.eq.s32.totalorder %v32, 3
    %vm97 = vcmp.eq.s32.totalorder %v33, 3
    %vm98 = vcmp.eq.s32.totalorder %v34, 3
    %vm99 = vcmp.eq.s32.totalorder %v35, 3
    %vm100 = vcmp.eq.s32.totalorder %v36, 3
    %vm101 = vcmp.eq.s32.totalorder %v37, 3
    %vm102 = vcmp.eq.s32.totalorder %v38, 3
    %vm103 = vcmp.eq.s32.totalorder %v39, 3
    %vm104 = vcmp.eq.s32.totalorder %v40, 3
    %vm105 = vcmp.eq.s32.totalorder %v41, 3
    %vm106 = vcmp.eq.s32.totalorder %v42, 3
    %vm107 = vcmp.eq.s32.totalorder %v43, 3
    %vm108 = vcmp.eq.s32.totalorder %v44, 3
    %vm109 = vcmp.eq.s32.totalorder %v45, 3
    %vm110 = vcmp.eq.s32.totalorder %v46, 3
    %vm111 = vcmp.eq.s32.totalorder %v47, 3
    %vm112 = vcmp.eq.s32.totalorder %v48, 3
    %vm113 = vcmp.eq.s32.totalorder %v49, 3
    %vm114 = vcmp.eq.s32.totalorder %v50, 3
    %vm115 = vcmp.eq.s32.totalorder %v51, 3
    %vm116 = vcmp.eq.s32.totalorder %v52, 3
    %vm117 = vcmp.eq.s32.totalorder %v53, 3
    %vm118 = vcmp.eq.s32.totalorder %v54, 3
    %vm119 = vcmp.eq.s32.totalorder %v55, 3
    %vm120 = vcmp.eq.s32.totalorder %v56, 3
    %vm121 = vcmp.eq.s32.totalorder %v57, 3
    %vm122 = vcmp.eq.s32.totalorder %v58, 3
    %vm123 = vcmp.eq.s32.totalorder %v59, 3
    %vm124 = vcmp.eq.s32.totalorder %v60, 3
    %vm125 = vcmp.eq.s32.totalorder %v61, 3
    %vm126 = vcmp.eq.s32.totalorder %v62, 3
    %vm127 = vcmp.eq.s32.totalorder %v63, 3
    %vm128 = vcmp.eq.s32.totalorder %v64, 3
    %vm129 = vcmp.eq.s32.totalorder %v65, 3
    %vm130 = vcmp.eq.s32.totalorder %v66, 3
    %vm131 = vcmp.eq.s32.totalorder %v67, 3
    %vm132 = vcmp.eq.s32.totalorder %v68, 3
    %vm133 = vcmp.eq.s32.totalorder %v69, 3
    %vm134 = vcmp.eq.s32.totalorder %v70, 3
    %vm135 = vcmp.eq.s32.totalorder %v71, 3
    %vm136 = vcmp.eq.s32.totalorder %v72, 3
    %vm137 = vcmp.eq.s32.totalorder %v73, 3
    %vm138 = vcmp.eq.s32.totalorder %v74, 3
    %vm139 = vcmp.eq.s32.totalorder %v75, 3
    %vm140 = vcmp.eq.s32.totalorder %v76, 3
    %vm141 = vcmp.eq.s32.totalorder %v77, 3
    %vm142 = vcmp.eq.s32.totalorder %v78, 3
    %vm143 = vcmp.eq.s32.totalorder %v79, 3
    %vm144 = vcmp.eq.s32.totalorder %v80, 3
    %vm145 = vcmp.eq.s32.totalorder %v81, 3
    %vm146 = vcmp.eq.s32.totalorder %v82, 3
    %vm147 = vcmp.eq.s32.totalorder %v83, 3
    %vm148 = vcmp.eq.s32.totalorder %v84, 3
    %vm149 = vcmp.eq.s32.totalorder %v85, 3
    %vm150 = vcmp.eq.s32.totalorder %v86, 3
    %v151 = vsel %vm87, 1, 0
    %v152 = vsel %vm88, 1, 0
    %v153 = vsel %vm89, 1, 0
    %v154 = vsel %vm90, 1, 0
    %v155 = vsel %vm91, 1, 0
    %v156 = vsel %vm92, 1, 0
    %v157 = vsel %vm93, 1, 0
    %v158 = vsel %vm94, 1, 0
    %v159 = vsel %vm95, 1, 0
    %v160 = vsel %vm96, 1, 0
    %v161 = vsel %vm97, 1, 0
    %v162 = vsel %vm98, 1, 0
    %v163 = vsel %vm99, 1, 0
    %v164 = vsel %vm100, 1, 0
    %v165 = vsel %vm101, 1, 0
    %v166 = vsel %vm102, 1, 0
    %v167 = vsel %vm103, 1, 0
    %v168 = vsel %vm104, 1, 0
    %v169 = vsel %vm105, 1, 0
    %v170 = vsel %vm106, 1, 0
    %v171 = vsel %vm107, 1, 0
    %v172 = vsel %vm108, 1, 0
    %v173 = vsel %vm109, 1, 0
    %v174 = vsel %vm110, 1, 0
    %v175 = vsel %vm111, 1, 0
    %v176 = vsel %vm112, 1, 0
    %v177 = vsel %vm113, 1, 0
    %v178 = vsel %vm114, 1, 0
    %v179 = vsel %vm115, 1, 0
    %v180 = vsel %vm116, 1, 0
    %v181 = vsel %vm117, 1, 0
    %v182 = vsel %vm118, 1, 0
    %v183 = vsel %vm119, 1, 0
    %v184 = vsel %vm120, 1, 0
    %v185 = vsel %vm121, 1, 0
    %v186 = vsel %vm122, 1, 0
    %v187 = vsel %vm123, 1, 0
    %v188 = vsel %vm124, 1, 0
    %v189 = vsel %vm125, 1, 0
    %v190 = vsel %vm126, 1, 0
    %v191 = vsel %vm127, 1, 0
    %v192 = vsel %vm128, 1, 0
    %v193 = vsel %vm129, 1, 0
    %v194 = vsel %vm130, 1, 0
    %v195 = vsel %vm131, 1, 0
    %v196 = vsel %vm132, 1, 0
    %v197 = vsel %vm133, 1, 0
    %v198 = vsel %vm134, 1, 0
    %v199 = vsel %vm135, 1, 0
    %v200 = vsel %vm136, 1, 0
    %v201 = vsel %vm137, 1, 0
    %v202 = vsel %vm138, 1, 0
    %v203 = vsel %vm139, 1, 0
    %v204 = vsel %vm140, 1, 0
    %v205 = vsel %vm141, 1, 0
    %v206 = vsel %vm142, 1, 0
    %v207 = vsel %vm143, 1, 0
    %v208 = vsel %vm144, 1, 0
    %v209 = vsel %vm145, 1, 0
    %v210 = vsel %vm146, 1, 0
    %v211 = vsel %vm147, 1, 0
    %v212 = vsel %vm148, 1, 0
    %v213 = vsel %vm149, 1, 0
    %v214 = vsel %vm150, 1, 0
    %v215 = vcvt.s32.f32 %v151
    %v216 = vcvt.s32.f32 %v152
    %v217 = vcvt.s32.f32 %v153
    %v218 = vcvt.s32.f32 %v154
    %v219 = vcvt.s32.f32 %v155
    %v220 = vcvt.s32.f32 %v156
    %v221 = vcvt.s32.f32 %v157
    %v222 = vcvt.s32.f32 %v158
    %v223 = vcvt.s32.f32 %v159
    %v224 = vcvt.s32.f32 %v160
    %v225 = vcvt.s32.f32 %v161
    %v226 = vcvt.s32.f32 %v162
    %v227 = vcvt.s32.f32 %v163
    %v228 = vcvt.s32.f32 %v164
    %v229 = vcvt.s32.f32 %v165
    %v230 = vcvt.s32.f32 %v166
    %v231 = vcvt.s32.f32 %v167
    %v232 = vcvt.s32.f32 %v168
    %v233 = vcvt.s32.f32 %v169
    %v234 = vcvt.s32.f32 %v170
    %v235 = vcvt.s32.f32 %v171
    %v236 = vcvt.s32.f32 %v172
    %v237 = vcvt.s32.f32 %v173
    %v238 = vcvt.s32.f32 %v174
    %v239 = vcvt.s32.f32 %v175
    %v240 = vcvt.s32.f32 %v176
    %v241 = vcvt.s32.f32 %v177
    %v242 = vcvt.s32.f32 %v178
    %v243 = vcvt.s32.f32 %v179
    %v244 = vcvt.s32.f32 %v180
    %v245 = vcvt.s32.f32 %v181
    %v246 = vcvt.s32.f32 %v182
    %v247 = vcvt.s32.f32 %v183
    %v248 = vcvt.s32.f32 %v184
    %v249 = vcvt.s32.f32 %v185
    %v250 = vcvt.s32.f32 %v186
    %v251 = vcvt.s32.f32 %v187
    %v252 = vcvt.s32.f32 %v188
    %v253 = vcvt.s32.f32 %v189
    %v254 = vcvt.s32.f32 %v190
    %v255 = vcvt.s32.f32 %v191
    %v256 = vcvt.s32.f32 %v192
    %v257 = vcvt.s32.f32 %v193
    %v258 = vcvt.s32.f32 %v194
    %v259 = vcvt.s32.f32 %v195
    %v260 = vcvt.s32.f32 %v196
    %v261 = vcvt.s32.f32 %v197
    %v262 = vcvt.s32.f32 %v198
    %v263 = vcvt.s32.f32 %v199
    %v264 = vcvt.s32.f32 %v200
    %v265 = vcvt.s32.f32 %v201
    %v266 = vcvt.s32.f32 %v202
    %v267 = vcvt.s32.f32 %v203
    %v268 = vcvt.s32.f32 %v204
    %v269 = vcvt.s32.f32 %v205
    %v270 = vcvt.s32.f32 %v206
    %v271 = vcvt.s32.f32 %v207
    %v272 = vcvt.s32.f32 %v208
    %v273 = vcvt.s32.f32 %v209
    %v274 = vcvt.s32.f32 %v210
    %v275 = vcvt.s32.f32 %v211
    %v276 = vcvt.s32.f32 %v212
    %v277 = vcvt.s32.f32 %v213
    %v278 = vcvt.s32.f32 %v214
    %279 = vst [vmem:[#allocation5] sm:$0xff] %v215
    %280 = vst [vmem:[#allocation5 + $0x8] sm:$0xff] %v216
    %281 = vst [vmem:[#allocation5 + $0x10] sm:$0xff] %v217
    %282 = vst [vmem:[#allocation5 + $0x18] sm:$0xff] %v218
    %283 = vst [vmem:[#allocation5 + $0x20] sm:$0xff] %v219
    %284 = vst [vmem:[#allocation5 + $0x28] sm:$0xff] %v220
    %285 = vst [vmem:[#allocation5 + $0x30] sm:$0xff] %v221
    %286 = vst [vmem:[#allocation5 + $0x38] sm:$0xff] %v222
    %287 = vst [vmem:[#allocation5 + $0x40] sm:$0xff] %v223
    %288 = vst [vmem:[#allocation5 + $0x48] sm:$0xff] %v224
    %289 = vst [vmem:[#allocation5 + $0x50] sm:$0xff] %v225
    %290 = vst [vmem:[#allocation5 + $0x58] sm:$0xff] %v226
    %291 = vst [vmem:[#allocation5 + $0x60] sm:$0xff] %v227
    %292 = vst [vmem:[#allocation5 + $0x68] sm:$0xff] %v228
    %293 = vst [vmem:[#allocation5 + $0x70] sm:$0xff] %v229
    %294 = vst [vmem:[#allocation5 + $0x78] sm:$0xff] %v230
    %295 = vst [vmem:[#allocation5 + $0x80] sm:$0xff] %v231
    %296 = vst [vmem:[#allocation5 + $0x88] sm:$0xff] %v232
    %297 = vst [vmem:[#allocation5 + $0x90] sm:$0xff] %v233
    %298 = vst [vmem:[#allocation5 + $0x98] sm:$0xff] %v234
    %299 = vst [vmem:[#allocation5 + $0xa0] sm:$0xff] %v235
    %300 = vst [vmem:[#allocation5 + $0xa8] sm:$0xff] %v236
    %301 = vst [vmem:[#allocation5 + $0xb0] sm:$0xff] %v237
    %302 = vst [vmem:[#allocation5 + $0xb8] sm:$0xff] %v238
    %303 = vst [vmem:[#allocation5 + $0xc0] sm:$0xff] %v239
    %304 = vst [vmem:[#allocation5 + $0xc8] sm:$0xff] %v240
    %305 = vst [vmem:[#allocation5 + $0xd0] sm:$0xff] %v241
    %306 = vst [vmem:[#allocation5 + $0xd8] sm:$0xff] %v242
    %307 = vst [vmem:[#allocation5 + $0xe0] sm:$0xff] %v243
    %308 = vst [vmem:[#allocation5 + $0xe8] sm:$0xff] %v244
    %309 = vst [vmem:[#allocation5 + $0xf0] sm:$0xff] %v245
    %310 = vst [vmem:[#allocation5 + $0xf8] sm:$0xff] %v246
    %311 = vst [vmem:[#allocation5 + $0x100] sm:$0xff] %v247
    %312 = vst [vmem:[#allocation5 + $0x108] sm:$0xff] %v248
    %313 = vst [vmem:[#allocation5 + $0x110] sm:$0xff] %v249
    %314 = vst [vmem:[#allocation5 + $0x118] sm:$0xff] %v250
    %315 = vst [vmem:[#allocation5 + $0x120] sm:$0xff] %v251
    %316 = vst [vmem:[#allocation5 + $0x128] sm:$0xff] %v252
    %317 = vst [vmem:[#allocation5 + $0x130] sm:$0xff] %v253
    %318 = vst [vmem:[#allocation5 + $0x138] sm:$0xff] %v254
    %319 = vst [vmem:[#allocation5 + $0x140] sm:$0xff] %v255
    %320 = vst [vmem:[#allocation5 + $0x148] sm:$0xff] %v256
    %321 = vst [vmem:[#allocation5 + $0x150] sm:$0xff] %v257
    %322 = vst [vmem:[#allocation5 + $0x158] sm:$0xff] %v258
    %323 = vst [vmem:[#allocation5 + $0x160] sm:$0xff] %v259
    %324 = vst [vmem:[#allocation5 + $0x168] sm:$0xff] %v260
    %325 = vst [vmem:[#allocation5 + $0x170] sm:$0xff] %v261
    %326 = vst [vmem:[#allocation5 + $0x178] sm:$0xff] %v262
    %327 = vst [vmem:[#allocation5 + $0x180] sm:$0xff] %v263
    %328 = vst [vmem:[#allocation5 + $0x188] sm:$0xff] %v264
    %329 = vst [vmem:[#allocation5 + $0x190] sm:$0xff] %v265
    %330 = vst [vmem:[#allocation5 + $0x198] sm:$0xff] %v266
    %331 = vst [vmem:[#allocation5 + $0x1a0] sm:$0xff] %v267
    %332 = vst [vmem:[#allocation5 + $0x1a8] sm:$0xff] %v268
    %333 = vst [vmem:[#allocation5 + $0x1b0] sm:$0xff] %v269
    %334 = vst [vmem:[#allocation5 + $0x1b8] sm:$0xff] %v270
    %335 = vst [vmem:[#allocation5 + $0x1c0] sm:$0xff] %v271
    %336 = vst [vmem:[#allocation5 + $0x1c8] sm:$0xff] %v272
    %337 = vst [vmem:[#allocation5 + $0x1d0] sm:$0xff] %v273
    %338 = vst [vmem:[#allocation5 + $0x1d8] sm:$0xff] %v274
    %339 = vst [vmem:[#allocation5 + $0x1e0] sm:$0xff] %v275
    %340 = vst [vmem:[#allocation5 + $0x1e8] sm:$0xff] %v276
    %341 = vst [vmem:[#allocation5 + $0x1f0] sm:$0xff] %v277
    %342 = vst [vmem:[#allocation5 + $0x1f8] sm:$0xff] %v278
    // Predicated region
    $region10: #{tpu_custom_call.1} parent=1 // pred_check
      _
    $region11: #{tpu_custom_call.1} parent=1 // pred_check_branch
      %344 = sbr.rel (0) target = $region13
    $region12: #{tpu_custom_call.1} parent=1 // pred_region
      %s346 = ssub.s32 8192, 8192
      %347 = vsyncadd [#allocation4], %s346
      %s348 = sshll.u32 [#allocation5], 4
      %s349 = int_to_ptr.vmem [resolvable:$true] %s348
      %354 = dma.vmem_to_hbm [thread:$0]  %s349, 8192, %s1, [#allocation4], 128, 128, 8
    $region13: #{tpu_custom_call.1} parent=1 // pred_fallthru
      _
    // Predicated region
    $region14: #{tpu_custom_call.1} parent=1 // pred_check
      _
    $region15: #{tpu_custom_call.1} parent=1 // pred_check_branch
      %356 = sbr.rel (0) target = $region17
    $region16: #{tpu_custom_call.1} parent=1 // pred_region
      %357 = dma.done [#allocation4], 8192
    $region17: #{tpu_custom_call.1} parent=1 // pred_fallthru
      _
    %358 = vsyncpa [#allocation3], 1
    %359 = vsyncpa [#allocation4], 1

</llo_original>
